<compile_context>
chip_gen: v5e
topology: v5e:2x2
jax: 0.10.0
libtpu: 0.0.40
codegen_flags: <defaults>
</compile_context>

<pallas_src>
import numpy as np
import jax
import jax.numpy as jnp
from jax.experimental import pallas as pl
from jax.experimental.pallas import tpu as pltpu

_LANE = 128
_MAX_TILE_ROWS = 8192   # 8192x128 f32 = 4 MiB per direction per step (amortizes ~0.35us/step)


def _cdiv(a, b):
    return -(-a // b)


def _round_up(n, m):
    return ((n + m - 1) // m) * m


def _sublane(itemsize):
    # Min sublane packing per dtype width: (8,128) f32, (16,128) bf16, (32,128) int8/fp8.
    return {4: 8, 2: 16, 1: 32}.get(int(itemsize), 8)


def _vmem_budget():
    """Generation-aware VMEM limit and live-tile budget for one pallas_call."""
    phys = 64 << 20                      # conservative fallback = v7x per-TC VMEM
    try:
        info = pltpu.get_tpu_info()
        phys = int(getattr(info, "vmem_capacity_bytes", phys)) or phys
    except Exception:
        pass
    limit = (phys * 3) // 4              # ~96 MiB on v5e/v6e (128 MiB phys), ~48 MiB on v7x (64 MiB)
    tile_budget = limit // 2             # leave headroom for compiler temporaries / spills
    return int(limit), int(tile_budget)


def _pick_tile_cap(pdim, itemsize, sublane, budget_bytes):
    """Largest row tile (multiple of `sublane`, <= _MAX_TILE_ROWS) whose live set fits.

    Live bytes per row in a grid step:
      2x double-buffered input tile + 2x double-buffered output tile (input dtype)
      + ~5 f32 temporaries (x_f32, mean, centered, centered^2/var, scaled result).
    """
    bytes_per_row = pdim * (4 * itemsize + 5 * 4)
    cap = budget_bytes // max(bytes_per_row, 1)
    cap = max(sublane, (cap // sublane) * sublane)
    return int(min(cap, _MAX_TILE_ROWS))


# ----------------------------- kernel-side math -----------------------------

def _ln_packed(x, seg_mat, gamma, beta, eps):
    """x: (T, 128) f32; each 128-lane row packs g = 128/dim independent rows.

    seg_mat is the (128,128) block-diagonal matrix with entries 1/dim stored in
    bf16 (exact: dim | 128 so 1/dim is a power of two).  Segment mean / variance
    run on the otherwise-idle MXU with an EXPLICIT bf16 hi/lo split of the f32
    operand, giving ~f32 accuracy independent of the default matmul precision.
    """
    def seg_mean(v):
        v_hi = v.astype(jnp.bfloat16)
        v_lo = (v - v_hi.astype(jnp.float32)).astype(jnp.bfloat16)
        return (jnp.dot(v_hi, seg_mat, preferred_element_type=jnp.float32)
                + jnp.dot(v_lo, seg_mat, preferred_element_type=jnp.float32))

    mean = seg_mean(x)
    centered = x - mean
    var = seg_mean(centered * centered)
    scale = gamma * jax.lax.rsqrt(var + eps)     # gamma folded into the rsqrt scale
    return centered * scale + beta


def _ln_reduce(x, gamma, beta, eps):
    """Plain lane-axis reduction LayerNorm (dim >= 128, or small/unaligned dims)."""
    mean = jnp.mean(x, axis=-1, keepdims=True)
    centered = x - mean
    var = jnp.mean(centered * centered, axis=-1, keepdims=True)
    return centered * (gamma * jax.lax.rsqrt(var + eps)) + beta


def _make_fused_ln_kernel(packed_flags, eps):
    """One grid step normalizes one row tile of every fused tensor.

    Input refs are grouped per tensor as (x, [seg_mat], gamma, beta); the output
    refs follow, one per tensor.
    """
    n = len(packed_flags)

    def kernel(*refs):
        pos = 0
        groups = []
        for packed in packed_flags:
            width = 4 if packed else 3
            groups.append(refs[pos:pos + width])
            pos += width
        out_refs = refs[pos:pos + n]
        for packed, grp, o_ref in zip(packed_flags, groups, out_refs):
            if packed:
                x_ref, s_ref, g_ref, b_ref = grp
                y = _ln_packed(x_ref[...].astype(jnp.float32), s_ref[...],
                               g_ref[...], b_ref[...], eps)
            else:
                x_ref, g_ref, b_ref = grp
                y = _ln_reduce(x_ref[...].astype(jnp.float32),
                               g_ref[...], b_ref[...], eps)
            o_ref[...] = y.astype(o_ref.dtype)

    return kernel


# ------------------------------- host wrapper --------------------------------

def layernorm_pallas_fused(xs, gammas, betas, *, eps=1e-5):
    """LayerNorm over the last dim of each tensor in `xs`, all in ONE pallas_call.

    Matches torch.nn.LayerNorm(dim) semantics (eps inside rsqrt, f32 math).
    No HBM pad copies and no output slicing: ragged tails are masked in-kernel.
    """
    n = len(xs)
    assert n >= 1 and n == len(gammas) == len(betas)
    vmem_limit, tile_budget = _vmem_budget()
    per_budget = max(tile_budget // n, 1 << 20)

    # --- per-tensor static layout info ---
    infos = []
    for x in xs:
        dim = int(x.shape[-1])
        rows = int(np.prod(x.shape[:-1])) if x.ndim > 1 else 1
        itemsize = int(jnp.dtype(x.dtype).itemsize)
        sub = _sublane(itemsize)
        g = _LANE // dim if (dim < _LANE and _LANE % dim == 0) else 1
        # Pack only when it's free: rows must be a multiple of g (no pad copy) and
        # there must be at least one full sublane tile of packed rows.
        if g > 1 and (rows % g != 0 or rows // g < sub):
            g = 1
        pdim = g * dim
        prow = rows // g if g > 1 else rows
        cap = _pick_tile_cap(pdim, itemsize, sub, per_budget)
        infos.append(dict(dim=dim, rows=rows, itemsize=itemsize, sub=sub,
                          g=g, pdim=pdim, prow=prow, cap=cap))

    # --- shared 1-D grid over row tiles ---
    n_tiles = max(_cdiv(i["prow"], i["cap"]) for i in infos)
    n_tiles = max(n_tiles, 1)
    # v7x megacore: guarantee a "parallel" grid has (even) work for both TensorCores.
    biggest = max(infos, key=lambda d: d["prow"] * d["pdim"] * d["itemsize"])
    big_bytes = biggest["prow"] * biggest["pdim"] * biggest["itemsize"]
    if big_bytes >= (1 << 20):
        if n_tiles == 1 and biggest["prow"] >= 2 * biggest["sub"]:
            n_tiles = 2
        elif n_tiles % 2 == 1:
            n_tiles += 1

    any_clamped = False
    for info in infos:
        tr = _round_up(max(_cdiv(info["prow"], n_tiles), 1), info["sub"])
        if tr >= info["prow"]:
            tr = info["prow"]          # single full-extent block: legal for any row count
        info["tile_rows"] = tr
        info["nblocks"] = _cdiv(info["prow"], tr)
        any_clamped |= info["nblocks"] < n_tiles

    # --- build operands / specs ---
    args, in_specs, out_shapes, out_specs, packed_flags = [], [], [], [], []
    for x, gamma, beta, info in zip(xs, gammas, betas, infos):
        dim, rows, g = info["dim"], info["rows"], info["g"]
        pdim, prow, tile_rows = info["pdim"], info["prow"], info["tile_rows"]
        last = info["nblocks"] - 1

        # Contiguous (metadata-only) reshapes; no jnp.pad, no epilogue slice.
        xp = x.reshape(rows, dim).reshape(prow, pdim)

        gp = jnp.tile(jnp.asarray(gamma, jnp.float32).reshape(1, dim), (1, g))
        bp = jnp.tile(jnp.asarray(beta, jnp.float32).reshape(1, dim), (1, g))

        packed = g > 1
        packed_flags.append(packed)

        # Clamp the block index so tensors needing fewer blocks than the shared grid
        # just overlap-recompute their last (resident) block; OOB tail rows of the
        # final block are masked on writeback by Pallas.
        row_map = (lambda i, last=last: (jnp.minimum(i, last), 0))

        args.append(xp)
        in_specs.append(pl.BlockSpec((tile_rows, pdim), row_map))
        if packed:
            seg = np.arange(pdim) // dim
            seg_mat = (seg[:, None] == seg[None, :]).astype(np.float32) / float(dim)
            args.append(jnp.asarray(seg_mat, jnp.bfloat16))   # exact in bf16 (1/dim pow2)
            in_specs.append(pl.BlockSpec((pdim, pdim), lambda i: (0, 0)))
        args.append(gp)
        in_specs.append(pl.BlockSpec((1, pdim), lambda i: (0, 0)))
        args.append(bp)
        in_specs.append(pl.BlockSpec((1, pdim), lambda i: (0, 0)))

        out_shapes.append(jax.ShapeDtypeStruct((prow, pdim), x.dtype))
        out_specs.append(pl.BlockSpec((tile_rows, pdim), row_map))

    # Identical-value duplicate writes (clamped blocks) must not be split across
    # cores under "parallel"; use "arbitrary" in that (rare, tiny-tensor) case.
    semantics = ("arbitrary",) if any_clamped else ("parallel",)

    outs = pl.pallas_call(
        _make_fused_ln_kernel(tuple(packed_flags), float(eps)),
        out_shape=tuple(out_shapes),
        grid=(n_tiles,),
        in_specs=in_specs,
        out_specs=tuple(out_specs),
        compiler_params=pltpu.CompilerParams(
            dimension_semantics=semantics,
            vmem_limit_bytes=vmem_limit,
        ),
    )(*args)
    # Note: if DMA is still exposed at large tiles, pipeline_mode=pl.Buffered(3) on the
    # x/context in_specs (only) is the next knob; left at the default double buffering.

    results = []
    for x, info, o in zip(xs, infos, outs):
        results.append(o.reshape(info["rows"], info["dim"]).reshape(x.shape))
    return results


def layernorm_pallas(x, gamma, beta, *, eps=1e-5):
    """Single-tensor convenience wrapper."""
    return layernorm_pallas_fused([x], [gamma], [beta], eps=eps)[0]


class PreNormPallas:
    """JAX/Pallas port of PreNorm(dim, fn, context_dim=None)."""

    # TODO(synk): `fn` is an arbitrary wrapped callable, so the LayerNorm cannot be
    # folded into fn's first matmul generically; when fn is a known projection, fuse
    # the normalization into that matmul kernel's LHS tile right after its DMA to
    # drop one full HBM round trip of x (and context).

    def __init__(self, dim, fn, context_dim=None):
        self.fn = fn
        # torch.nn.LayerNorm default init: weight = 1, bias = 0, eps = 1e-5.
        self.eps = 1e-5
        self.norm_w = jnp.ones((dim,), jnp.float32)
        self.norm_b = jnp.zeros((dim,), jnp.float32)
        self.has_context_norm = context_dim is not None
        if self.has_context_norm:
            self.norm_ctx_w = jnp.ones((context_dim,), jnp.float32)
            self.norm_ctx_b = jnp.zeros((context_dim,), jnp.float32)

    def __call__(self, x, **kwargs):
        if self.has_context_norm:
            context = kwargs["context"]
            # Both normalizations in a single fused pallas_call (one launch, one pipeline).
            x_n, ctx_n = layernorm_pallas_fused(
                [x, context],
                [self.norm_w, self.norm_ctx_w],
                [self.norm_b, self.norm_ctx_b],
                eps=self.eps)
            kwargs = dict(kwargs, context=ctx_n)
            return self.fn(x_n, **kwargs)
        x_n = layernorm_pallas(x, self.norm_w, self.norm_b, eps=self.eps)
        return self.fn(x_n, **kwargs)


def _reference_layernorm(x, gamma, beta, eps=1e-5):
    x = x.astype(jnp.float32)
    mean = jnp.mean(x, axis=-1, keepdims=True)
    var = jnp.mean((x - mean) ** 2, axis=-1, keepdims=True)
    return (x - mean) * jax.lax.rsqrt(var + eps) * gamma + beta


if __name__ == "__main__":
    key = jax.random.PRNGKey(0)
    k_x, k_ctx, k_w, k_wc, k_b, k_big, k_tile, k_bf = jax.random.split(key, 8)

    batch, seq, dim, context_dim = 2, 8, 32, 16
    x = jax.random.normal(k_x, (batch, seq, dim), jnp.float32)
    context = jax.random.normal(k_ctx, (batch, seq, context_dim), jnp.float32)

    # PreNorm wraps an arbitrary `fn`; here a deterministic cross-term linear.
    W = jax.random.normal(k_w, (dim, dim), jnp.float32) * 0.02
    Wc = jax.random.normal(k_wc, (context_dim, dim), jnp.float32) * 0.02
    b = jax.random.normal(k_b, (dim,), jnp.float32) * 0.02

    def fn(x_in, *, context):
        return x_in @ W + context @ Wc + b

    module = PreNormPallas(dim, fn, context_dim=context_dim)
    out = jax.block_until_ready(module(x, context=context))

    # 1) Tight check on the fused Pallas LayerNorm outputs.
    xn, cn = layernorm_pallas_fused(
        [x, context],
        [module.norm_w, module.norm_ctx_w],
        [module.norm_b, module.norm_ctx_b])
    xn, cn = jax.block_until_ready((xn, cn))
    xn_ref = _reference_layernorm(x, module.norm_w, module.norm_b)
    cn_ref = _reference_layernorm(context, module.norm_ctx_w, module.norm_ctx_b)
    np.testing.assert_allclose(np.asarray(xn), np.asarray(xn_ref), rtol=2e-5, atol=2e-5)
    np.testing.assert_allclose(np.asarray(cn), np.asarray(cn_ref), rtol=2e-5, atol=2e-5)

    # 2) End-to-end module forward (fn runs at default XLA matmul precision).
    ref = fn(xn_ref, context=cn_ref)
    np.testing.assert_allclose(np.asarray(out), np.asarray(ref), rtol=1e-4, atol=1e-4)

    # 3) Reduce path (dim >= 128) with a ragged row count (15 rows) - no pad copy.
    x_big = jax.random.normal(k_big, (3, 5, 256), jnp.float32)
    g_big = jnp.full((256,), 1.5, jnp.float32)
    b_big = jnp.full((256,), -0.25, jnp.float32)
    y_big = jax.block_until_ready(layernorm_pallas(x_big, g_big, b_big))
    np.testing.assert_allclose(
        np.asarray(y_big),
        np.asarray(_reference_layernorm(x_big, g_big, b_big)),
        rtol=2e-5, atol=2e-5)

    # 4) Multi-tile grid + in-kernel masked tail (packed path) fused with a tiny
    #    tensor that exercises the clamped/overlap-recompute index map.
    x_t = jax.random.normal(k_tile, (4, 5000, dim), jnp.float32)
    xt_n, ctx_n2 = layernorm_pallas_fused(
        [x_t, context],
        [module.norm_w, module.norm_ctx_w],
        [module.norm_b, module.norm_ctx_b])
    xt_n, ctx_n2 = jax.block_until_ready((xt_n, ctx_n2))
    np.testing.assert_allclose(
        np.asarray(xt_n),
        np.asarray(_reference_layernorm(x_t, module.norm_w, module.norm_b)),
        rtol=2e-5, atol=2e-5)
    np.testing.assert_allclose(np.asarray(ctx_n2), np.asarray(cn_ref), rtol=2e-5, atol=2e-5)

    # 5) bf16 input: dtype-aware (16,128) sublane tiling on the packed path.
    x_bf = jax.random.normal(k_bf, (8, 64, dim), jnp.float32).astype(jnp.bfloat16)
    y_bf = jax.block_until_ready(layernorm_pallas(x_bf, module.norm_w, module.norm_b))
    y_bf_ref = _reference_layernorm(x_bf.astype(jnp.float32), module.norm_w, module.norm_b)
    np.testing.assert_allclose(np.asarray(y_bf, dtype=np.float32),
                               np.asarray(y_bf_ref), rtol=5e-2, atol=5e-2)

    print("KERNEL_OK")
</pallas_src>

<mosaic_0001>
module attributes {stable_mosaic.version = 11 : i64} {
  func.func @kernel(%arg0: i32, %arg1: memref<16x32xf32, #tpu.memory_space<vmem>>, %arg2: memref<1x32xf32, #tpu.memory_space<vmem>>, %arg3: memref<1x32xf32, #tpu.memory_space<vmem>>, %arg4: memref<16x16xf32, #tpu.memory_space<vmem>>, %arg5: memref<1x16xf32, #tpu.memory_space<vmem>>, %arg6: memref<1x16xf32, #tpu.memory_space<vmem>>, %arg7: memref<16x32xf32, #tpu.memory_space<vmem>>, %arg8: memref<16x16xf32, #tpu.memory_space<vmem>>) attributes {dimension_semantics = [#tpu.dimension_semantics<parallel>], iteration_bounds = array<i64: 1>, scalar_prefetch = 0 : i64, scratch_operands = 0 : i64, tpu.core_type = #tpu.core_type<tc>, window_params = [{transform_indices = @transform_0, window_bounds = array<i64: 16, 32>}, {pipeline_mode = #tpu.pipeline_mode<synchronous>, transform_indices = @transform_1, window_bounds = array<i64: 1, 32>}, {pipeline_mode = #tpu.pipeline_mode<synchronous>, transform_indices = @transform_2, window_bounds = array<i64: 1, 32>}, {transform_indices = @transform_3, window_bounds = array<i64: 16, 16>}, {pipeline_mode = #tpu.pipeline_mode<synchronous>, transform_indices = @transform_4, window_bounds = array<i64: 1, 16>}, {pipeline_mode = #tpu.pipeline_mode<synchronous>, transform_indices = @transform_5, window_bounds = array<i64: 1, 16>}, {transform_indices = @transform_6, window_bounds = array<i64: 16, 32>}, {transform_indices = @transform_7, window_bounds = array<i64: 16, 16>}]} {
    %c0 = arith.constant 0 : index
    %c0_0 = arith.constant 0 : index
    %0 = vector.load %arg1[%c0, %c0_0] : memref<16x32xf32, #tpu.memory_space<vmem>>, vector<16x32xf32>
    %c0_1 = arith.constant 0 : index
    %c0_2 = arith.constant 0 : index
    %1 = vector.load %arg2[%c0_1, %c0_2] : memref<1x32xf32, #tpu.memory_space<vmem>>, vector<1x32xf32>
    %c0_3 = arith.constant 0 : index
    %c0_4 = arith.constant 0 : index
    %2 = vector.load %arg3[%c0_3, %c0_4] : memref<1x32xf32, #tpu.memory_space<vmem>>, vector<1x32xf32>
    %cst = arith.constant dense<0.000000e+00> : vector<16xf32>
    %3 = vector.multi_reduction <add>, %0, %cst [1] : vector<16x32xf32> to vector<16xf32>
    %4 = vector.shape_cast %3 : vector<16xf32> to vector<16x1xf32>
    %cst_5 = arith.constant 3.200000e+01 : f32
    %5 = vector.broadcast %cst_5 : f32 to vector<16x1xf32>
    %6 = arith.divf %4, %5 : vector<16x1xf32>
    %7 = vector.broadcast %6 : vector<16x1xf32> to vector<16x32xf32>
    %8 = arith.subf %0, %7 : vector<16x32xf32>
    %9 = arith.mulf %8, %8 : vector<16x32xf32>
    %cst_6 = arith.constant dense<0.000000e+00> : vector<16xf32>
    %10 = vector.multi_reduction <add>, %9, %cst_6 [1] : vector<16x32xf32> to vector<16xf32>
    %11 = vector.shape_cast %10 : vector<16xf32> to vector<16x1xf32>
    %cst_7 = arith.constant 3.200000e+01 : f32
    %12 = vector.broadcast %cst_7 : f32 to vector<16x1xf32>
    %13 = arith.divf %11, %12 : vector<16x1xf32>
    %cst_8 = arith.constant 9.99999974E-6 : f32
    %14 = vector.broadcast %cst_8 : f32 to vector<16x1xf32>
    %15 = arith.addf %13, %14 : vector<16x1xf32>
    %16 = math.rsqrt %15 : vector<16x1xf32>
    %17 = vector.broadcast %1 : vector<1x32xf32> to vector<16x32xf32>
    %18 = vector.broadcast %16 : vector<16x1xf32> to vector<16x32xf32>
    %19 = arith.mulf %17, %18 : vector<16x32xf32>
    %20 = arith.mulf %8, %19 : vector<16x32xf32>
    %21 = vector.broadcast %2 : vector<1x32xf32> to vector<16x32xf32>
    %22 = arith.addf %20, %21 : vector<16x32xf32>
    %c0_9 = arith.constant 0 : index
    %c0_10 = arith.constant 0 : index
    %23 = vector.load %arg7[%c0_9, %c0_10] : memref<16x32xf32, #tpu.memory_space<vmem>>, vector<16x32xf32>
    tpu.vector_store %arg7[%c0_9, %c0_10], %22 {strides = array<i32>} : memref<16x32xf32, #tpu.memory_space<vmem>>, vector<16x32xf32>,
    %c0_11 = arith.constant 0 : index
    %c0_12 = arith.constant 0 : index
    %24 = vector.load %arg4[%c0_11, %c0_12] : memref<16x16xf32, #tpu.memory_space<vmem>>, vector<16x16xf32>
    %c0_13 = arith.constant 0 : index
    %c0_14 = arith.constant 0 : index
    %25 = vector.load %arg5[%c0_13, %c0_14] : memref<1x16xf32, #tpu.memory_space<vmem>>, vector<1x16xf32>
    %c0_15 = arith.constant 0 : index
    %c0_16 = arith.constant 0 : index
    %26 = vector.load %arg6[%c0_15, %c0_16] : memref<1x16xf32, #tpu.memory_space<vmem>>, vector<1x16xf32>
    %cst_17 = arith.constant dense<0.000000e+00> : vector<16xf32>
    %27 = vector.multi_reduction <add>, %24, %cst_17 [1] : vector<16x16xf32> to vector<16xf32>
    %28 = vector.shape_cast %27 : vector<16xf32> to vector<16x1xf32>
    %cst_18 = arith.constant 1.600000e+01 : f32
    %29 = vector.broadcast %cst_18 : f32 to vector<16x1xf32>
    %30 = arith.divf %28, %29 : vector<16x1xf32>
    %31 = vector.broadcast %30 : vector<16x1xf32> to vector<16x16xf32>
    %32 = arith.subf %24, %31 : vector<16x16xf32>
    %33 = arith.mulf %32, %32 : vector<16x16xf32>
    %cst_19 = arith.constant dense<0.000000e+00> : vector<16xf32>
    %34 = vector.multi_reduction <add>, %33, %cst_19 [1] : vector<16x16xf32> to vector<16xf32>
    %35 = vector.shape_cast %34 : vector<16xf32> to vector<16x1xf32>
    %cst_20 = arith.constant 1.600000e+01 : f32
    %36 = vector.broadcast %cst_20 : f32 to vector<16x1xf32>
    %37 = arith.divf %35, %36 : vector<16x1xf32>
    %cst_21 = arith.constant 9.99999974E-6 : f32
    %38 = vector.broadcast %cst_21 : f32 to vector<16x1xf32>
    %39 = arith.addf %37, %38 : vector<16x1xf32>
    %40 = math.rsqrt %39 : vector<16x1xf32>
    %41 = vector.broadcast %25 : vector<1x16xf32> to vector<16x16xf32>
    %42 = vector.broadcast %40 : vector<16x1xf32> to vector<16x16xf32>
    %43 = arith.mulf %41, %42 : vector<16x16xf32>
    %44 = arith.mulf %32, %43 : vector<16x16xf32>
    %45 = vector.broadcast %26 : vector<1x16xf32> to vector<16x16xf32>
    %46 = arith.addf %44, %45 : vector<16x16xf32>
    %c0_22 = arith.constant 0 : index
    %c0_23 = arith.constant 0 : index
    %47 = vector.load %arg8[%c0_22, %c0_23] : memref<16x16xf32, #tpu.memory_space<vmem>>, vector<16x16xf32>
    tpu.vector_store %arg8[%c0_22, %c0_23], %46 {strides = array<i32>} : memref<16x16xf32, #tpu.memory_space<vmem>>, vector<16x16xf32>,
    return
  }
  func.func @transform_0(%arg0: i32) -> (i32, i32) {
    %c0_i32 = arith.constant 0 : i32
    %0 = arith.minsi %arg0, %c0_i32 : i32
    %c0_i32_0 = arith.constant 0 : i32
    %c0_i32_1 = arith.constant 0 : i32
    return %0, %c0_i32_0 : i32, i32
  }
  func.func @transform_1(%arg0: i32) -> (i32, i32) {
    %c0_i32 = arith.constant 0 : i32
    %c0_i32_0 = arith.constant 0 : i32
    %c0_i32_1 = arith.constant 0 : i32
    return %c0_i32, %c0_i32_0 : i32, i32
  }
  func.func @transform_2(%arg0: i32) -> (i32, i32) {
    %c0_i32 = arith.constant 0 : i32
    %c0_i32_0 = arith.constant 0 : i32
    %c0_i32_1 = arith.constant 0 : i32
    return %c0_i32, %c0_i32_0 : i32, i32
  }
  func.func @transform_3(%arg0: i32) -> (i32, i32) {
    %c0_i32 = arith.constant 0 : i32
    %0 = arith.minsi %arg0, %c0_i32 : i32
    %c0_i32_0 = arith.constant 0 : i32
    %c0_i32_1 = arith.constant 0 : i32
    return %0, %c0_i32_0 : i32, i32
  }
  func.func @transform_4(%arg0: i32) -> (i32, i32) {
    %c0_i32 = arith.constant 0 : i32
    %c0_i32_0 = arith.constant 0 : i32
    %c0_i32_1 = arith.constant 0 : i32
    return %c0_i32, %c0_i32_0 : i32, i32
  }
  func.func @transform_5(%arg0: i32) -> (i32, i32) {
    %c0_i32 = arith.constant 0 : i32
    %c0_i32_0 = arith.constant 0 : i32
    %c0_i32_1 = arith.constant 0 : i32
    return %c0_i32, %c0_i32_0 : i32, i32
  }
  func.func @transform_6(%arg0: i32) -> (i32, i32) {
    %c0_i32 = arith.constant 0 : i32
    %0 = arith.minsi %arg0, %c0_i32 : i32
    %c0_i32_0 = arith.constant 0 : i32
    %c0_i32_1 = arith.constant 0 : i32
    return %0, %c0_i32_0 : i32, i32
  }
  func.func @transform_7(%arg0: i32) -> (i32, i32) {
    %c0_i32 = arith.constant 0 : i32
    %0 = arith.minsi %arg0, %c0_i32 : i32
    %c0_i32_0 = arith.constant 0 : i32
    %c0_i32_1 = arith.constant 0 : i32
    return %0, %c0_i32_0 : i32, i32
  }
}

</mosaic_0001>

<llo_original>
// kernel: tpu_custom_call.1
$region0: #{tpu_custom_call.1}
  #allocation0 [shape = 'u32[]', space=smem, size = 0x4, offset = 0x4, fixed_abs, tag = 'smem constant byte address 0x4 - core index']
  #allocation1 [shape = 'u32[72,128]{1,0:T(1,128)}', space=vmem, size = 0x9000, scoped, tag = 'internal scratch']
  %s0 = inlined_call_operand.hbm [shape: f32[16,32], index: 0, kind: input, shape index: {}]
  %s1 = inlined_call_operand.hbm [shape: f32[1,32], index: 1, kind: input, shape index: {}]
  %s2 = inlined_call_operand.vmem [shape: f32[1,32], index: 2, kind: input, shape index: {}]
  %s3 = inlined_call_operand.hbm [shape: f32[16,16], index: 3, kind: input, shape index: {}]
  %s4 = inlined_call_operand.vmem [shape: f32[1,16], index: 4, kind: input, shape index: {}]
  %s5 = inlined_call_operand.vmem [shape: f32[1,16], index: 5, kind: input, shape index: {}]
  %s6 = inlined_call_operand.hbm [shape: f32[16,32], index: 6, kind: output, shape index: {0}]
  %s7 = inlined_call_operand.hbm [shape: f32[16,16], index: 7, kind: output, shape index: {1}]
  %8 = xla_tuple %s6, %s7
  %s9 = sld [smem:[#allocation0]]
  $region54: #{tpu_custom_call.1} parent=0
    _
  %s11 = ssub.s32 1, %s9
  %s12 = scalar_select 0, %s11, %s9
  $region1: #{tpu_custom_call.1} parent=0
    #allocation2 [shape = 'u8[8192]{0}', space=vmem, size = 0x2000, scoped, tag = 'input window, operand 0, single buffered']
    #allocation3 [shape = 's32[1]{0}', space=sflag, size = 0x4, scoped, tag = 'scoped memory for tpu_custom_call.1']
    #allocation4 [shape = 's32[1]{0}', space=sflag, size = 0x4, scoped, tag = 'scoped memory for tpu_custom_call.1']
    #allocation5 [shape = 'u8[512]{0}', space=vmem, size = 0x400, scoped, tag = 'input window, operand 1, single buffered']
    #allocation6 [shape = 's32[1]{0}', space=sflag, size = 0x4, scoped, tag = 'scoped memory for tpu_custom_call.1']
    #allocation7 [shape = 'u8[8192]{0}', space=vmem, size = 0x2000, scoped, tag = 'input window, operand 3, single buffered']
    #allocation8 [shape = 'u8[8192]{0}', space=vmem, size = 0x2000, scoped, tag = 'output window, operand 0, single buffered']
    #allocation9 [shape = 'u8[8192]{0}', space=vmem, size = 0x2000, scoped, tag = 'output window, operand 1, single buffered']
    #allocation10 [shape = 's32[1]{0}', space=sflag, size = 0x4, scoped, tag = 'scoped memory for tpu_custom_call.1']
    %13 = vsyncpa [#allocation3], 0
    %14 = vsyncpa [#allocation6], 0
    %15 = vsyncpa [#allocation4], 0
    %16 = vsyncpa [#allocation10], 0
    // Predicated region
    $region2: #{tpu_custom_call.1} parent=1 // pred_check
      _
    $region3: #{tpu_custom_call.1} parent=1 // pred_check_branch
      %18 = sbr.rel (0) target = $region5
    $region4: #{tpu_custom_call.1} parent=1 // pred_region
      %20 = vsyncadd [#allocation3], 0
      %s21 = sshll.u32 %s0, 4
      %s22 = int_to_ptr.hbm [resolvable:$true] %s21
      %s23 = sshll.u32 [#allocation2], 4
      %s24 = int_to_ptr.vmem [resolvable:$true] %s23
      %29 = dma.hbm_to_vmem [thread:$0]  %s22, 256, %s24, [#allocation3], 128, 128, 8
    $region5: #{tpu_custom_call.1} parent=1 // pred_fallthru
      _
    // Predicated region
    $region6: #{tpu_custom_call.1} parent=1 // pred_check
      _
    $region7: #{tpu_custom_call.1} parent=1 // pred_check_branch
      %31 = sbr.rel (0) target = $region9
    $region8: #{tpu_custom_call.1} parent=1 // pred_region
      %33 = vsyncadd [#allocation6], 0
      %s35 = sshll.u32 %s1, 4
      %s36 = int_to_ptr.hbm [resolvable:$true] %s35
      %s37 = sshll.u32 [#allocation5], 4
      %s38 = int_to_ptr.vmem [resolvable:$true] %s37
      %40 = dma.hbm_to_vmem [thread:$0]  %s36, 16, %s38, [#allocation6]
    $region9: #{tpu_custom_call.1} parent=1 // pred_fallthru
      _
    // Predicated region
    $region10: #{tpu_custom_call.1} parent=1 // pred_check
      _
    $region11: #{tpu_custom_call.1} parent=1 // pred_check_branch
      %42 = sbr.rel (0) target = $region13
    $region12: #{tpu_custom_call.1} parent=1 // pred_region
      _
    $region13: #{tpu_custom_call.1} parent=1 // pred_fallthru
      _
    // Predicated region
    $region14: #{tpu_custom_call.1} parent=1 // pred_check
      _
    $region15: #{tpu_custom_call.1} parent=1 // pred_check_branch
      %44 = sbr.rel (0) target = $region17
    $region16: #{tpu_custom_call.1} parent=1 // pred_region
      %46 = vsyncadd [#allocation6], 0
      %s47 = sshll.u32 %s3, 4
      %s48 = int_to_ptr.hbm [resolvable:$true] %s47
      %s49 = sshll.u32 [#allocation7], 4
      %s50 = int_to_ptr.vmem [resolvable:$true] %s49
      %55 = dma.hbm_to_vmem [thread:$0]  %s48, 256, %s50, [#allocation6], 128, 128, 8
    $region17: #{tpu_custom_call.1} parent=1 // pred_fallthru
      _
    // Predicated region
    $region18: #{tpu_custom_call.1} parent=1 // pred_check
      _
    $region19: #{tpu_custom_call.1} parent=1 // pred_check_branch
      %57 = sbr.rel (0) target = $region21
    $region20: #{tpu_custom_call.1} parent=1 // pred_region
      _
    $region21: #{tpu_custom_call.1} parent=1 // pred_fallthru
      _
    // Predicated region
    $region22: #{tpu_custom_call.1} parent=1 // pred_check
      _
    $region23: #{tpu_custom_call.1} parent=1 // pred_check_branch
      %59 = sbr.rel (0) target = $region25
    $region24: #{tpu_custom_call.1} parent=1 // pred_region
      _
    $region25: #{tpu_custom_call.1} parent=1 // pred_fallthru
      _
    // Predicated region
    $region26: #{tpu_custom_call.1} parent=1 // pred_check
      _
    $region27: #{tpu_custom_call.1} parent=1 // pred_check_branch
      %61 = sbr.rel (0) target = $region29
    $region28: #{tpu_custom_call.1} parent=1 // pred_region
      %63 = dma.done [#allocation3], 256
    $region29: #{tpu_custom_call.1} parent=1 // pred_fallthru
      _
    // Predicated region
    $region30: #{tpu_custom_call.1} parent=1 // pred_check
      _
    $region31: #{tpu_custom_call.1} parent=1 // pred_check_branch
      %65 = sbr.rel (0) target = $region33
    $region32: #{tpu_custom_call.1} parent=1 // pred_region
      %67 = dma.done [#allocation6], 16
    $region33: #{tpu_custom_call.1} parent=1 // pred_fallthru
      _
    // Predicated region
    $region34: #{tpu_custom_call.1} parent=1 // pred_check
      _
    $region35: #{tpu_custom_call.1} parent=1 // pred_check_branch
      %69 = sbr.rel (0) target = $region37
    $region36: #{tpu_custom_call.1} parent=1 // pred_region
      %71 = dma.done [#allocation6], 256
    $region37: #{tpu_custom_call.1} parent=1 // pred_fallthru
      _
    %v72 = vld [vmem:[#allocation2] sm:$0xff]
    %v73 = vld [vmem:[#allocation2 + $0x8] sm:$0xff]
    %v74 = vld [vmem:[#allocation5] sm:$0x1]
    %v75 = vld [vmem:[%s2] sm:$0x1]
    %vm76 = vcmask 261120
    %v77 = vsel %vm76, %v72, 0.0
    %78 = vadd.xlane.f32.xlu0 %v77
    %v79 = vpop.xlane.xlu0 %78
    %v80 = vsel %vm76, %v73, 0.0
    %81 = vadd.xlane.f32.xlu0 %v80
    %v82 = vpop.xlane.xlu0 %81
    %v83 = vrcp.pop 32.0
    %v84 = vmul.f32 32.0, %v83
    %v85 = vsub.f32 1.0, %v84
    %v86 = vmul.f32 %v83, %v85
    %v87 = vadd.f32 %v83, %v86
    %vm88 = vweird.f32 %v83
    %v89 = vsel %vm88, %v83, %v87
    %v90 = vmul.f32 %v79, %v89
    %v91 = vmul.f32 %v82, %v89
    %v92 = vsub.f32 %v72, %v90
    %v93 = vsub.f32 %v73, %v91
    %v94 = vmul.f32 %v92, %v92
    %v95 = vmul.f32 %v93, %v93
    %v96 = vsel %vm76, %v94, 0.0
    %97 = vadd.xlane.f32.xlu0 %v96
    %v98 = vpop.xlane.xlu0 %97
    %v99 = vsel %vm76, %v95, 0.0
    %100 = vadd.xlane.f32.xlu0 %v99
    %v101 = vpop.xlane.xlu0 %100
    %v102 = vmul.f32 %v98, %v89
    %v103 = vmul.f32 %v101, %v89
    %v104 = vadd.f32 %v102, 1e-05
    %v105 = vadd.f32 %v103, 1e-05
    %v106 = vrsqrt.pop %v104
    %v107 = vmul.f32 %v106, %v104
    %v108 = vmul.f32 %v107, %v106
    %v109 = vmul.f32 0.5, %v108
    %v110 = vsub.f32 1.5, %v109
    %v111 = vmul.f32 %v106, %v110
    %vm112 = vweird.f32 %v104
    %vm113 = vweird.f32 %v106
    %vm114 = vmor %vm112, %vm113
    %v115 = vsel %vm114, %v106, %v111
    %v116 = vrsqrt.pop %v105
    %v117 = vmul.f32 %v116, %v105
    %v118 = vmul.f32 %v117, %v116
    %v119 = vmul.f32 0.5, %v118
    %v120 = vsub.f32 1.5, %v119
    %v121 = vmul.f32 %v116, %v120
    %vm122 = vweird.f32 %v105
    %vm123 = vweird.f32 %v116
    %vm124 = vmor %vm122, %vm123
    %v125 = vsel %vm124, %v116, %v121
    %v127 = vperm.slane %v74, 0
    %v129 = vmul.f32 %v127, %v115
    %v130 = vmul.f32 %v127, %v125
    %v131 = vmul.f32 %v92, %v129
    %v132 = vmul.f32 %v93, %v130
    %v134 = vperm.slane %v75, 0
    %v136 = vadd.f32 %v131, %v134
    %v137 = vadd.f32 %v132, %v134
    %138 = vst.msk [vmem:[#allocation8] sm:$0xff] %vm76, %v136
    %139 = vst.msk [vmem:[#allocation8 + $0x8] sm:$0xff] %vm76, %v137
    %v140 = vld [vmem:[#allocation7] sm:$0xff]
    %v141 = vld [vmem:[#allocation7 + $0x8] sm:$0xff]
    %v142 = vld [vmem:[%s4] sm:$0x1]
    %v143 = vld [vmem:[%s5] sm:$0x1]
    %vm144 = vcmask 130048
    %v145 = vsel %vm144, %v140, 0.0
    %146 = vadd.xlane.f32.xlu0 %v145
    %v147 = vpop.xlane.xlu0 %146
    %v148 = vsel %vm144, %v141, 0.0
    %149 = vadd.xlane.f32.xlu0 %v148
    %v150 = vpop.xlane.xlu0 %149
    %v151 = vrcp.pop 16.0
    %v152 = vmul.f32 16.0, %v151
    %v153 = vsub.f32 1.0, %v152
    %v154 = vmul.f32 %v151, %v153
    %v155 = vadd.f32 %v151, %v154
    %vm156 = vweird.f32 %v151
    %v157 = vsel %vm156, %v151, %v155
    %v158 = vmul.f32 %v147, %v157
    %v159 = vmul.f32 %v150, %v157
    %v160 = vsub.f32 %v140, %v158
    %v161 = vsub.f32 %v141, %v159
    %v162 = vmul.f32 %v160, %v160
    %v163 = vmul.f32 %v161, %v161
    %v164 = vsel %vm144, %v162, 0.0
    %165 = vadd.xlane.f32.xlu0 %v164
    %v166 = vpop.xlane.xlu0 %165
    %v167 = vsel %vm144, %v163, 0.0
    %168 = vadd.xlane.f32.xlu0 %v167
    %v169 = vpop.xlane.xlu0 %168
    %v170 = vmul.f32 %v166, %v157
    %v171 = vmul.f32 %v169, %v157
    %v172 = vadd.f32 %v170, 1e-05
    %v173 = vadd.f32 %v171, 1e-05
    %v174 = vrsqrt.pop %v172
    %v175 = vmul.f32 %v174, %v172
    %v176 = vmul.f32 %v175, %v174
    %v177 = vmul.f32 0.5, %v176
    %v178 = vsub.f32 1.5, %v177
    %v179 = vmul.f32 %v174, %v178
    %vm180 = vweird.f32 %v172
    %vm181 = vweird.f32 %v174
    %vm182 = vmor %vm180, %vm181
    %v183 = vsel %vm182, %v174, %v179
    %v184 = vrsqrt.pop %v173
    %v185 = vmul.f32 %v184, %v173
    %v186 = vmul.f32 %v185, %v184
    %v187 = vmul.f32 0.5, %v186
    %v188 = vsub.f32 1.5, %v187
    %v189 = vmul.f32 %v184, %v188
    %vm190 = vweird.f32 %v173
    %vm191 = vweird.f32 %v184
    %vm192 = vmor %vm190, %vm191
    %v193 = vsel %vm192, %v184, %v189
    %v195 = vperm.slane %v142, 0
    %v197 = vmul.f32 %v195, %v183
    %v198 = vmul.f32 %v195, %v193
    %v199 = vmul.f32 %v160, %v197
    %v200 = vmul.f32 %v161, %v198
    %v202 = vperm.slane %v143, 0
    %v204 = vadd.f32 %v199, %v202
    %v205 = vadd.f32 %v200, %v202
    %206 = vst.msk [vmem:[#allocation9] sm:$0xff] %vm144, %v204
    %207 = vst.msk [vmem:[#allocation9 + $0x8] sm:$0xff] %vm144, %v205
    // Predicated region
    $region38: #{tpu_custom_call.1} parent=1 // pred_check
      _
    $region39: #{tpu_custom_call.1} parent=1 // pred_check_branch
      %209 = sbr.rel (0) target = $region41
    $region40: #{tpu_custom_call.1} parent=1 // pred_region
      %211 = vsyncadd [#allocation4], 0
      %s212 = sshll.u32 [#allocation8], 4
      %s213 = int_to_ptr.vmem [resolvable:$true] %s212
      %s214 = sshll.u32 %s6, 4
      %s215 = int_to_ptr.hbm [resolvable:$true] %s214
      %220 = dma.vmem_to_hbm [thread:$0]  %s213, 256, %s215, [#allocation4], 128, 128, 8
    $region41: #{tpu_custom_call.1} parent=1 // pred_fallthru
      _
    // Predicated region
    $region42: #{tpu_custom_call.1} parent=1 // pred_check
      _
    $region43: #{tpu_custom_call.1} parent=1 // pred_check_branch
      %222 = sbr.rel (0) target = $region45
    $region44: #{tpu_custom_call.1} parent=1 // pred_region
      %224 = vsyncadd [#allocation10], 0
      %s225 = sshll.u32 [#allocation9], 4
      %s226 = int_to_ptr.vmem [resolvable:$true] %s225
      %s227 = sshll.u32 %s7, 4
      %s228 = int_to_ptr.hbm [resolvable:$true] %s227
      %233 = dma.vmem_to_hbm [thread:$0]  %s226, 256, %s228, [#allocation10], 128, 128, 8
    $region45: #{tpu_custom_call.1} parent=1 // pred_fallthru
      _
    // Predicated region
    $region46: #{tpu_custom_call.1} parent=1 // pred_check
      _
    $region47: #{tpu_custom_call.1} parent=1 // pred_check_branch
      %235 = sbr.rel (0) target = $region49
    $region48: #{tpu_custom_call.1} parent=1 // pred_region
      %237 = dma.done [#allocation4], 256
    $region49: #{tpu_custom_call.1} parent=1 // pred_fallthru
      _
    // Predicated region
    $region50: #{tpu_custom_call.1} parent=1 // pred_check
      _
    $region51: #{tpu_custom_call.1} parent=1 // pred_check_branch
      %239 = sbr.rel (0) target = $region53
    $region52: #{tpu_custom_call.1} parent=1 // pred_region
      %241 = dma.done [#allocation10], 256
    $region53: #{tpu_custom_call.1} parent=1 // pred_fallthru
      _
    %242 = vsyncpa [#allocation3], 1
    %243 = vsyncpa [#allocation6], 1
    %244 = vsyncpa [#allocation4], 1
    %245 = vsyncpa [#allocation10], 1

</llo_original>
